<compile_context>
chip_gen: v7x
topology: tpu7x:2x2x1
jax: 0.10.0
libtpu: 0.0.40
codegen_flags: <defaults>
</compile_context>

<pallas_src>
import jax
import jax.numpy as jnp
from jax.experimental import pallas as pl
from jax.experimental.pallas import tpu as pltpu

F_IN = 4
H1, H2, H3 = 128, 64, 32
NUM_CLASSES = 3
OUT_PAD = 128  # fc4 weight/bias padded to a lane-dense 128-wide MXU output (store slices to 3)


def iris_mlp_kernel(x_ref,
                    w1_ref, t1_ref,
                    w2_ref, b2_ref,
                    w3_ref, b3_ref,
                    w4_ref, b4_ref,
                    o_ref):
    """Fused forward: fc1(+folded BN) -> ReLU -> [dropout=id] -> fc2 -> ReLU -> fc3 -> ReLU -> fc4."""
    # fc1 with BatchNorm folded into w1 / t1.  bf16 MXU operands, f32 accumulation.
    x = x_ref[...].astype(jnp.bfloat16)                                       # [TB, 4]
    h = jnp.dot(x, w1_ref[...], preferred_element_type=jnp.float32) + t1_ref[...]
    h = jnp.maximum(h, 0.0)                                                   # [TB, 128] f32

    # Dropout(0.5): identity in inference mode.

    # fc2 + ReLU
    h = jnp.dot(h.astype(jnp.bfloat16), w2_ref[...],
                preferred_element_type=jnp.float32) + b2_ref[...]
    h = jnp.maximum(h, 0.0)                                                   # [TB, 64]

    # fc3 + ReLU
    h = jnp.dot(h.astype(jnp.bfloat16), w3_ref[...],
                preferred_element_type=jnp.float32) + b3_ref[...]
    h = jnp.maximum(h, 0.0)                                                   # [TB, 32]

    # fc4 (no activation): compute lane-dense 128-wide, store only the 3 real logits.
    logits = jnp.dot(h.astype(jnp.bfloat16), w4_ref[...],
                     preferred_element_type=jnp.float32) + b4_ref[...]        # [TB, 128]
    o_ref[...] = logits[:, :NUM_CLASSES]                                      # [TB, 3] f32


def _round_up(n, m):
    return ((n + m - 1) // m) * m


def prepare_params(params, eps=1e-5):
    """One-time (load-time) parameter prep: BN fold, fc4 padding, bf16 weight casts.

    Keeps ~10 small XLA ops out of the per-call hot path.
    """
    bf16 = jnp.bfloat16
    # Fold BatchNorm1d (eval) and fc1 bias into w1' / t1'.
    s1 = params["bn1_gamma"] / jnp.sqrt(params["bn1_var"] + eps)              # [128]
    t1 = params["bn1_beta"] + (params["b1"] - params["bn1_mean"]) * s1        # [128]
    w1 = params["w1"] * s1[None, :]                                           # [4, 128]

    # Pad fc4 to a lane-dense 128-wide MXU output (columns >= 3 are zero).
    w4 = jnp.zeros((H3, OUT_PAD), jnp.float32).at[:, :NUM_CLASSES].set(params["w4"])
    b4 = jnp.zeros((OUT_PAD,), jnp.float32).at[:NUM_CLASSES].set(params["b4"])

    return dict(
        w1=w1.astype(bf16), t1=t1[None, :].astype(jnp.float32),
        w2=params["w2"].astype(bf16), b2=params["b2"][None, :].astype(jnp.float32),
        w3=params["w3"].astype(bf16), b3=params["b3"][None, :].astype(jnp.float32),
        w4=w4.astype(bf16), b4=b4[None, :].astype(jnp.float32),
    )


def iris_classifier_forward(x, prep, *, tb=4096):
    """x: [B, 4] float32.  prep: output of prepare_params().  Returns [B, 3] float32."""
    B, f = x.shape
    assert f == F_IN

    # ---- Batch tiling ----
    # Tiles are multiples of 8 (sublane); >= 2 grid steps when B >= 16 so the "parallel"
    # batch axis shards across both TensorCores on v7x; TB capped at `tb` to bound VMEM.
    B8 = _round_up(max(B, 8), 8)
    nsteps = pl.cdiv(B8, tb)
    if B8 >= 16:
        nsteps = max(nsteps, 2)
    TB = _round_up(pl.cdiv(B8, nsteps), 8)
    B_pad = nsteps * TB
    # Common path (8-aligned B): B_pad == B, so no pad op and no output slice.
    x_in = x if B_pad == B else jnp.pad(x, ((0, B_pad - B), (0, 0)))

    def resident(shape):
        # Weights / biases: same block every grid step -> stays resident in VMEM.
        return pl.BlockSpec(shape, lambda i: (0, 0))

    out = pl.pallas_call(
        iris_mlp_kernel,
        out_shape=jax.ShapeDtypeStruct((B_pad, NUM_CLASSES), jnp.float32),
        grid=(nsteps,),
        in_specs=[
            pl.BlockSpec((TB, F_IN), lambda i: (i, 0)),   # x tile, pipelined per step
            resident((F_IN, H1)), resident((1, H1)),
            resident((H1, H2)), resident((1, H2)),
            resident((H2, H3)), resident((1, H3)),
            resident((H3, OUT_PAD)), resident((1, OUT_PAD)),
        ],
        # Narrow logits block: last dim equals full array dim (3) -> legal; writeback is a
        # contiguous 12 B/row DMA instead of the old 512 B/row padded slab.
        out_specs=pl.BlockSpec((TB, NUM_CLASSES), lambda i: (i, 0)),
        compiler_params=pltpu.CompilerParams(
            dimension_semantics=("parallel",),
            vmem_limit_bytes=48 * 1024 * 1024),
    )(x_in,
      prep["w1"], prep["t1"],
      prep["w2"], prep["b2"],
      prep["w3"], prep["b3"],
      prep["w4"], prep["b4"])

    return out if B_pad == B else out[:B]


def init_params(key):
    """Deterministic init mimicking PyTorch nn.Linear default (uniform +-1/sqrt(fan_in))."""
    dims = [(F_IN, H1), (H1, H2), (H2, H3), (H3, NUM_CLASSES)]
    params = {}
    keys = jax.random.split(key, 2 * len(dims))
    for i, (fan_in, fan_out) in enumerate(dims):
        bound = 1.0 / jnp.sqrt(jnp.float32(fan_in))
        params[f"w{i+1}"] = jax.random.uniform(
            keys[2 * i], (fan_in, fan_out), jnp.float32, -bound, bound)      # stored as [in, out]
        params[f"b{i+1}"] = jax.random.uniform(
            keys[2 * i + 1], (fan_out,), jnp.float32, -bound, bound)
    # BatchNorm1d(128) default init / running stats.
    params["bn1_gamma"] = jnp.ones((H1,), jnp.float32)
    params["bn1_beta"] = jnp.zeros((H1,), jnp.float32)
    params["bn1_mean"] = jnp.zeros((H1,), jnp.float32)
    params["bn1_var"] = jnp.ones((H1,), jnp.float32)
    return params


def reference_forward_f32(x, params):
    """Pure-JAX f32 reference (exact module semantics, eval mode)."""
    eps = 1e-5
    s = params["bn1_gamma"] / jnp.sqrt(params["bn1_var"] + eps)
    t = params["bn1_beta"] - params["bn1_mean"] * s
    h = jnp.maximum((x @ params["w1"] + params["b1"]) * s + t, 0.0)
    h = jnp.maximum(h @ params["w2"] + params["b2"], 0.0)
    h = jnp.maximum(h @ params["w3"] + params["b3"], 0.0)
    return h @ params["w4"] + params["b4"]


def reference_forward_bf16(x, params):
    """Pure-JAX reference matching the kernel's bf16-operand / f32-accumulate arithmetic."""
    eps = 1e-5
    bf16 = jnp.bfloat16
    s = params["bn1_gamma"] / jnp.sqrt(params["bn1_var"] + eps)
    t = params["bn1_beta"] + (params["b1"] - params["bn1_mean"]) * s
    w1 = (params["w1"] * s[None, :]).astype(bf16)
    h = jnp.dot(x.astype(bf16), w1, preferred_element_type=jnp.float32) + t
    h = jnp.maximum(h, 0.0)
    h = jnp.dot(h.astype(bf16), params["w2"].astype(bf16),
                preferred_element_type=jnp.float32) + params["b2"]
    h = jnp.maximum(h, 0.0)
    h = jnp.dot(h.astype(bf16), params["w3"].astype(bf16),
                preferred_element_type=jnp.float32) + params["b3"]
    h = jnp.maximum(h, 0.0)
    return jnp.dot(h.astype(bf16), params["w4"].astype(bf16),
                   preferred_element_type=jnp.float32) + params["b4"]


if __name__ == "__main__":
    key = jax.random.PRNGKey(0)
    k_x, k_p = jax.random.split(key)

    B = 32  # small batch; kernel tiles for arbitrary B (B=32 -> TB=16, grid=(2,))
    x = jax.random.normal(k_x, (B, F_IN), jnp.float32)   # Iris: 4 features per sample
    params = init_params(k_p)

    # One-time parameter prep, out of the hot path.
    prep = prepare_params(params)

    fwd = jax.jit(iris_classifier_forward)
    out = fwd(x, prep)
    out = jax.block_until_ready(out)
    assert out.shape == (B, NUM_CLASSES)

    # Tight check vs a reference using identical bf16-operand / f32-accumulate math.
    ref_bf16 = reference_forward_bf16(x, params)
    assert jnp.allclose(out, ref_bf16, atol=5e-3, rtol=5e-3), \
        "Pallas output mismatch vs bf16 reference"

    # Loose sanity check vs the exact f32 module semantics (bf16 quantization error only).
    ref_f32 = reference_forward_f32(x, params)
    assert jnp.allclose(out, ref_f32, atol=2e-1, rtol=1e-1), \
        "Pallas output diverged from f32 reference beyond bf16 tolerance"

    print("KERNEL_OK")
</pallas_src>

<mosaic_0001>
module attributes {stable_mosaic.version = 11 : i64} {
  func.func @iris_mlp_kernel(%arg0: i32, %arg1: memref<16x4xf32, #tpu.memory_space<vmem>>, %arg2: memref<4x128xbf16, #tpu.memory_space<vmem>>, %arg3: memref<1x128xf32, #tpu.memory_space<vmem>>, %arg4: memref<128x64xbf16, #tpu.memory_space<vmem>>, %arg5: memref<1x64xf32, #tpu.memory_space<vmem>>, %arg6: memref<64x32xbf16, #tpu.memory_space<vmem>>, %arg7: memref<1x32xf32, #tpu.memory_space<vmem>>, %arg8: memref<32x128xbf16, #tpu.memory_space<vmem>>, %arg9: memref<1x128xf32, #tpu.memory_space<vmem>>, %arg10: memref<16x3xf32, #tpu.memory_space<vmem>>) attributes {dimension_semantics = [#tpu.dimension_semantics<parallel>], iteration_bounds = array<i64: 2>, scalar_prefetch = 0 : i64, scratch_operands = 0 : i64, tpu.core_type = #tpu.core_type<tc>, window_params = [{transform_indices = @transform_0, window_bounds = array<i64: 16, 4>}, {pipeline_mode = #tpu.pipeline_mode<synchronous>, transform_indices = @transform_1, window_bounds = array<i64: 4, 128>}, {pipeline_mode = #tpu.pipeline_mode<synchronous>, transform_indices = @transform_2, window_bounds = array<i64: 1, 128>}, {pipeline_mode = #tpu.pipeline_mode<synchronous>, transform_indices = @transform_3, window_bounds = array<i64: 128, 64>}, {pipeline_mode = #tpu.pipeline_mode<synchronous>, transform_indices = @transform_4, window_bounds = array<i64: 1, 64>}, {pipeline_mode = #tpu.pipeline_mode<synchronous>, transform_indices = @transform_5, window_bounds = array<i64: 64, 32>}, {pipeline_mode = #tpu.pipeline_mode<synchronous>, transform_indices = @transform_6, window_bounds = array<i64: 1, 32>}, {pipeline_mode = #tpu.pipeline_mode<synchronous>, transform_indices = @transform_7, window_bounds = array<i64: 32, 128>}, {pipeline_mode = #tpu.pipeline_mode<synchronous>, transform_indices = @transform_8, window_bounds = array<i64: 1, 128>}, {transform_indices = @transform_9, window_bounds = array<i64: 16, 3>}]} {
    %c0 = arith.constant 0 : index
    %c0_0 = arith.constant 0 : index
    %0 = vector.load %arg1[%c0, %c0_0] : memref<16x4xf32, #tpu.memory_space<vmem>>, vector<16x4xf32>
    %1 = arith.truncf %0 : vector<16x4xf32> to vector<16x4xbf16>
    %c0_1 = arith.constant 0 : index
    %c0_2 = arith.constant 0 : index
    %2 = vector.load %arg2[%c0_1, %c0_2] : memref<4x128xbf16, #tpu.memory_space<vmem>>, vector<4x128xbf16>
    %cst = arith.constant dense<0.000000e+00> : vector<16x128xf32>
    %3 = tpu.matmul %1, %2, %cst {dimension_numbers = #tpu.dot_dimension_numbers<[1], [0], [0], [1], [0, 0, 1, 1], [], []>} : vector<16x4xbf16>, vector<4x128xbf16>, vector<16x128xf32> -> vector<16x128xf32>
    %c0_3 = arith.constant 0 : index
    %c0_4 = arith.constant 0 : index
    %4 = vector.load %arg3[%c0_3, %c0_4] : memref<1x128xf32, #tpu.memory_space<vmem>>, vector<1x128xf32>
    %5 = vector.broadcast %4 : vector<1x128xf32> to vector<16x128xf32>
    %6 = arith.addf %3, %5 : vector<16x128xf32>
    %cst_5 = arith.constant 0.000000e+00 : f32
    %7 = vector.broadcast %cst_5 : f32 to vector<16x128xf32>
    %8 = arith.maximumf %6, %7 : vector<16x128xf32>
    %9 = arith.truncf %8 : vector<16x128xf32> to vector<16x128xbf16>
    %c0_6 = arith.constant 0 : index
    %c0_7 = arith.constant 0 : index
    %10 = vector.load %arg4[%c0_6, %c0_7] : memref<128x64xbf16, #tpu.memory_space<vmem>>, vector<128x64xbf16>
    %cst_8 = arith.constant dense<0.000000e+00> : vector<16x64xf32>
    %11 = tpu.matmul %9, %10, %cst_8 {dimension_numbers = #tpu.dot_dimension_numbers<[1], [0], [0], [1], [0, 0, 1, 1], [], []>} : vector<16x128xbf16>, vector<128x64xbf16>, vector<16x64xf32> -> vector<16x64xf32>
    %c0_9 = arith.constant 0 : index
    %c0_10 = arith.constant 0 : index
    %12 = vector.load %arg5[%c0_9, %c0_10] : memref<1x64xf32, #tpu.memory_space<vmem>>, vector<1x64xf32>
    %13 = vector.broadcast %12 : vector<1x64xf32> to vector<16x64xf32>
    %14 = arith.addf %11, %13 : vector<16x64xf32>
    %cst_11 = arith.constant 0.000000e+00 : f32
    %15 = vector.broadcast %cst_11 : f32 to vector<16x64xf32>
    %16 = arith.maximumf %14, %15 : vector<16x64xf32>
    %17 = arith.truncf %16 : vector<16x64xf32> to vector<16x64xbf16>
    %c0_12 = arith.constant 0 : index
    %c0_13 = arith.constant 0 : index
    %18 = vector.load %arg6[%c0_12, %c0_13] : memref<64x32xbf16, #tpu.memory_space<vmem>>, vector<64x32xbf16>
    %cst_14 = arith.constant dense<0.000000e+00> : vector<16x32xf32>
    %19 = tpu.matmul %17, %18, %cst_14 {dimension_numbers = #tpu.dot_dimension_numbers<[1], [0], [0], [1], [0, 0, 1, 1], [], []>} : vector<16x64xbf16>, vector<64x32xbf16>, vector<16x32xf32> -> vector<16x32xf32>
    %c0_15 = arith.constant 0 : index
    %c0_16 = arith.constant 0 : index
    %20 = vector.load %arg7[%c0_15, %c0_16] : memref<1x32xf32, #tpu.memory_space<vmem>>, vector<1x32xf32>
    %21 = vector.broadcast %20 : vector<1x32xf32> to vector<16x32xf32>
    %22 = arith.addf %19, %21 : vector<16x32xf32>
    %cst_17 = arith.constant 0.000000e+00 : f32
    %23 = vector.broadcast %cst_17 : f32 to vector<16x32xf32>
    %24 = arith.maximumf %22, %23 : vector<16x32xf32>
    %25 = arith.truncf %24 : vector<16x32xf32> to vector<16x32xbf16>
    %c0_18 = arith.constant 0 : index
    %c0_19 = arith.constant 0 : index
    %26 = vector.load %arg8[%c0_18, %c0_19] : memref<32x128xbf16, #tpu.memory_space<vmem>>, vector<32x128xbf16>
    %cst_20 = arith.constant dense<0.000000e+00> : vector<16x128xf32>
    %27 = tpu.matmul %25, %26, %cst_20 {dimension_numbers = #tpu.dot_dimension_numbers<[1], [0], [0], [1], [0, 0, 1, 1], [], []>} : vector<16x32xbf16>, vector<32x128xbf16>, vector<16x128xf32> -> vector<16x128xf32>
    %c0_21 = arith.constant 0 : index
    %c0_22 = arith.constant 0 : index
    %28 = vector.load %arg9[%c0_21, %c0_22] : memref<1x128xf32, #tpu.memory_space<vmem>>, vector<1x128xf32>
    %29 = vector.broadcast %28 : vector<1x128xf32> to vector<16x128xf32>
    %30 = arith.addf %27, %29 : vector<16x128xf32>
    %31 = vector.extract_strided_slice %30 {offsets = [0, 0], sizes = [16, 3], strides = [1, 1]} : vector<16x128xf32> to vector<16x3xf32>
    %c0_23 = arith.constant 0 : index
    %c0_24 = arith.constant 0 : index
    %32 = vector.load %arg10[%c0_23, %c0_24] : memref<16x3xf32, #tpu.memory_space<vmem>>, vector<16x3xf32>
    tpu.vector_store %arg10[%c0_23, %c0_24], %31 {strides = array<i32>} : memref<16x3xf32, #tpu.memory_space<vmem>>, vector<16x3xf32>,
    return
  }
  func.func @transform_0(%arg0: i32) -> (i32, i32) {
    %c0_i32 = arith.constant 0 : i32
    %c0_i32_0 = arith.constant 0 : i32
    return %arg0, %c0_i32 : i32, i32
  }
  func.func @transform_1(%arg0: i32) -> (i32, i32) {
    %c0_i32 = arith.constant 0 : i32
    %c0_i32_0 = arith.constant 0 : i32
    %c0_i32_1 = arith.constant 0 : i32
    return %c0_i32, %c0_i32_0 : i32, i32
  }
  func.func @transform_2(%arg0: i32) -> (i32, i32) {
    %c0_i32 = arith.constant 0 : i32
    %c0_i32_0 = arith.constant 0 : i32
    %c0_i32_1 = arith.constant 0 : i32
    return %c0_i32, %c0_i32_0 : i32, i32
  }
  func.func @transform_3(%arg0: i32) -> (i32, i32) {
    %c0_i32 = arith.constant 0 : i32
    %c0_i32_0 = arith.constant 0 : i32
    %c0_i32_1 = arith.constant 0 : i32
    return %c0_i32, %c0_i32_0 : i32, i32
  }
  func.func @transform_4(%arg0: i32) -> (i32, i32) {
    %c0_i32 = arith.constant 0 : i32
    %c0_i32_0 = arith.constant 0 : i32
    %c0_i32_1 = arith.constant 0 : i32
    return %c0_i32, %c0_i32_0 : i32, i32
  }
  func.func @transform_5(%arg0: i32) -> (i32, i32) {
    %c0_i32 = arith.constant 0 : i32
    %c0_i32_0 = arith.constant 0 : i32
    %c0_i32_1 = arith.constant 0 : i32
    return %c0_i32, %c0_i32_0 : i32, i32
  }
  func.func @transform_6(%arg0: i32) -> (i32, i32) {
    %c0_i32 = arith.constant 0 : i32
    %c0_i32_0 = arith.constant 0 : i32
    %c0_i32_1 = arith.constant 0 : i32
    return %c0_i32, %c0_i32_0 : i32, i32
  }
  func.func @transform_7(%arg0: i32) -> (i32, i32) {
    %c0_i32 = arith.constant 0 : i32
    %c0_i32_0 = arith.constant 0 : i32
    %c0_i32_1 = arith.constant 0 : i32
    return %c0_i32, %c0_i32_0 : i32, i32
  }
  func.func @transform_8(%arg0: i32) -> (i32, i32) {
    %c0_i32 = arith.constant 0 : i32
    %c0_i32_0 = arith.constant 0 : i32
    %c0_i32_1 = arith.constant 0 : i32
    return %c0_i32, %c0_i32_0 : i32, i32
  }
  func.func @transform_9(%arg0: i32) -> (i32, i32) {
    %c0_i32 = arith.constant 0 : i32
    %c0_i32_0 = arith.constant 0 : i32
    return %arg0, %c0_i32 : i32, i32
  }
}

</mosaic_0001>

<llo_original>
// kernel: iris_classifier_forward.1
$region0: #{iris_classifier_forward.1}
  #allocation0 [shape = 'u32[]', space=smem, size = 0x4, offset = 0x4, fixed_abs, tag = 'smem constant byte address 0x4 - core index']
  #allocation1 [shape = 'u32[144,128]{1,0:T(1,128)}', space=vmem, size = 0x12000, scoped, tag = 'internal scratch']
  %s0 = inlined_call_operand.vmem [shape: f32[32,4], index: 0, kind: input, shape index: {}]
  %s1 = inlined_call_operand.vmem [shape: bf16[4,128], index: 1, kind: input, shape index: {}]
  %s2 = inlined_call_operand.vmem [shape: f32[1,128], index: 2, kind: input, shape index: {}]
  %s3 = inlined_call_operand.vmem [shape: bf16[128,64], index: 3, kind: input, shape index: {}]
  %s4 = inlined_call_operand.vmem [shape: f32[1,64], index: 4, kind: input, shape index: {}]
  %s5 = inlined_call_operand.vmem [shape: bf16[64,32], index: 5, kind: input, shape index: {}]
  %s6 = inlined_call_operand.vmem [shape: f32[1,32], index: 6, kind: input, shape index: {}]
  %s7 = inlined_call_operand.vmem [shape: bf16[32,128], index: 7, kind: input, shape index: {}]
  %s8 = inlined_call_operand.vmem [shape: f32[1,128], index: 8, kind: input, shape index: {}]
  %s9 = inlined_call_operand.vmem [shape: f32[32,3], index: 9, kind: output, shape index: {}]
  %s10 = sld [smem:[#allocation0]]
  $region69: #{iris_classifier_forward.1} parent=0
    _
  %s12 = ssub.s32 1, %s10
  %s13 = scalar_select 0, %s12, %s10
  loop: start=0, step=1, limit=4
  $region2: #{iris_classifier_forward.1} parent=0 // loop_pre_header
    _
  $region3: #{iris_classifier_forward.1} parent=0 // loop_header
    %s15 = sphi 0, %s19
    %p16 = scmp.ge.s32.totalorder %s15, 4
    %s25 = sphi 0, %s27
    %s28 = sphi 0, %s25
    %s29 = sphi 0, %s28
    %s45 = sphi 0, %s29
    %s49 = sphi 0, %s49
    %s51 = sphi 0, %s49
    %s52 = sphi 0, %s51
    %s66 = sphi 0, %s52
    %s70 = sphi 0, %s70
    %s72 = sphi 0, %s70
    %s73 = sphi 0, %s72
    %s87 = sphi 0, %s73
    %s91 = sphi 0, %s91
    %s93 = sphi 0, %s91
    %s94 = sphi 0, %s93
    %s108 = sphi 0, %s94
    %s112 = sphi 0, %s112
    %s114 = sphi 0, %s112
    %s115 = sphi 0, %s114
    %s129 = sphi 0, %s115
    %s133 = sphi 0, %s133
    %s135 = sphi 0, %s133
    %s136 = sphi 0, %s135
    %s150 = sphi 0, %s136
    %s154 = sphi 0, %s154
    %s156 = sphi 0, %s154
    %s157 = sphi 0, %s156
    %s171 = sphi 0, %s157
    %s175 = sphi 0, %s175
    %s177 = sphi 0, %s175
    %s178 = sphi 0, %s177
    %s192 = sphi 0, %s178
    %s196 = sphi 0, %s196
    %s198 = sphi 0, %s196
    %s199 = sphi 0, %s198
    %s213 = sphi 0, %s199
    %s219 = sphi 0, %s221
    %s222 = sphi 0, %s219
    %s223 = sphi 0, %s222
    %s239 = sphi 0, %s223
  $region4: #{iris_classifier_forward.1} parent=0 // loop_header_branch
    %18 = sbr.rel (%p16) target = $region8
  $region5: #{iris_classifier_forward.1} parent=0 // loop_body
    %s20 = ssub.s32 %s15, 1
    %s21 = ssub.s32 %s15, 2
    %s22 = sadd.s32 %s15, 1
    %s23 = ssub.s32 %s15, %s22
    %p24 = scmp.eq.s32.totalorder %s23, 0
    %s26 = sadd.s32 %s25, 1
    %s27 = scalar_select %p24, %s25, %s26
    %p30 = pneg %p24
    %p31 = scmp.eq.s32.totalorder %s15, 1
    %p32 = por %p30, %p31
    %p33 = scmp.ne.s32.totalorder %s25, %s28
    %p34 = scmp.eq.s32.totalorder %s15, 0
    %p35 = por %p33, %p34
    %p36 = scmp.ne.s32.totalorder %s25, %s28
    %p37 = scmp.eq.s32.totalorder %s20, 1
    %p38 = por %p36, %p37
    %p39 = scmp.ne.s32.totalorder %s28, %s29
    %p40 = scmp.eq.s32.totalorder %s20, 0
    %p41 = por %p39, %p40
    %p42 = scmp.ne.s32.totalorder %s28, %s29
    %p43 = scmp.eq.s32.totalorder %s21, 1
    %p44 = por %p42, %p43
    %p46 = scmp.ne.s32.totalorder %s29, %s45
    %p47 = scmp.eq.s32.totalorder %s21, 0
    %p48 = por %p46, %p47
    %s50 = sadd.s32 %s49, 1
    %p53 = scmp.eq.s32.totalorder %s15, 1
    %p54 = scmp.ne.s32.totalorder %s49, %s51
    %p55 = scmp.eq.s32.totalorder %s15, 0
    %p56 = por %p54, %p55
    %p57 = scmp.ne.s32.totalorder %s49, %s51
    %p58 = scmp.eq.s32.totalorder %s20, 1
    %p59 = por %p57, %p58
    %p60 = scmp.ne.s32.totalorder %s51, %s52
    %p61 = scmp.eq.s32.totalorder %s20, 0
    %p62 = por %p60, %p61
    %p63 = scmp.ne.s32.totalorder %s51, %s52
    %p64 = scmp.eq.s32.totalorder %s21, 1
    %p65 = por %p63, %p64
    %p67 = scmp.ne.s32.totalorder %s52, %s66
    %p68 = scmp.eq.s32.totalorder %s21, 0
    %p69 = por %p67, %p68
    %s71 = sadd.s32 %s70, 1
    %p74 = scmp.eq.s32.totalorder %s15, 1
    %p75 = scmp.ne.s32.totalorder %s70, %s72
    %p76 = scmp.eq.s32.totalorder %s15, 0
    %p77 = por %p75, %p76
    %p78 = scmp.ne.s32.totalorder %s70, %s72
    %p79 = scmp.eq.s32.totalorder %s20, 1
    %p80 = por %p78, %p79
    %p81 = scmp.ne.s32.totalorder %s72, %s73
    %p82 = scmp.eq.s32.totalorder %s20, 0
    %p83 = por %p81, %p82
    %p84 = scmp.ne.s32.totalorder %s72, %s73
    %p85 = scmp.eq.s32.totalorder %s21, 1
    %p86 = por %p84, %p85
    %p88 = scmp.ne.s32.totalorder %s73, %s87
    %p89 = scmp.eq.s32.totalorder %s21, 0
    %p90 = por %p88, %p89
    %s92 = sadd.s32 %s91, 1
    %p95 = scmp.eq.s32.totalorder %s15, 1
    %p96 = scmp.ne.s32.totalorder %s91, %s93
    %p97 = scmp.eq.s32.totalorder %s15, 0
    %p98 = por %p96, %p97
    %p99 = scmp.ne.s32.totalorder %s91, %s93
    %p100 = scmp.eq.s32.totalorder %s20, 1
    %p101 = por %p99, %p100
    %p102 = scmp.ne.s32.totalorder %s93, %s94
    %p103 = scmp.eq.s32.totalorder %s20, 0
    %p104 = por %p102, %p103
    %p105 = scmp.ne.s32.totalorder %s93, %s94
    %p106 = scmp.eq.s32.totalorder %s21, 1
    %p107 = por %p105, %p106
    %p109 = scmp.ne.s32.totalorder %s94, %s108
    %p110 = scmp.eq.s32.totalorder %s21, 0
    %p111 = por %p109, %p110
    %s113 = sadd.s32 %s112, 1
    %p116 = scmp.eq.s32.totalorder %s15, 1
    %p117 = scmp.ne.s32.totalorder %s112, %s114
    %p118 = scmp.eq.s32.totalorder %s15, 0
    %p119 = por %p117, %p118
    %p120 = scmp.ne.s32.totalorder %s112, %s114
    %p121 = scmp.eq.s32.totalorder %s20, 1
    %p122 = por %p120, %p121
    %p123 = scmp.ne.s32.totalorder %s114, %s115
    %p124 = scmp.eq.s32.totalorder %s20, 0
    %p125 = por %p123, %p124
    %p126 = scmp.ne.s32.totalorder %s114, %s115
    %p127 = scmp.eq.s32.totalorder %s21, 1
    %p128 = por %p126, %p127
    %p130 = scmp.ne.s32.totalorder %s115, %s129
    %p131 = scmp.eq.s32.totalorder %s21, 0
    %p132 = por %p130, %p131
    %s134 = sadd.s32 %s133, 1
    %p137 = scmp.eq.s32.totalorder %s15, 1
    %p138 = scmp.ne.s32.totalorder %s133, %s135
    %p139 = scmp.eq.s32.totalorder %s15, 0
    %p140 = por %p138, %p139
    %p141 = scmp.ne.s32.totalorder %s133, %s135
    %p142 = scmp.eq.s32.totalorder %s20, 1
    %p143 = por %p141, %p142
    %p144 = scmp.ne.s32.totalorder %s135, %s136
    %p145 = scmp.eq.s32.totalorder %s20, 0
    %p146 = por %p144, %p145
    %p147 = scmp.ne.s32.totalorder %s135, %s136
    %p148 = scmp.eq.s32.totalorder %s21, 1
    %p149 = por %p147, %p148
    %p151 = scmp.ne.s32.totalorder %s136, %s150
    %p152 = scmp.eq.s32.totalorder %s21, 0
    %p153 = por %p151, %p152
    %s155 = sadd.s32 %s154, 1
    %p158 = scmp.eq.s32.totalorder %s15, 1
    %p159 = scmp.ne.s32.totalorder %s154, %s156
    %p160 = scmp.eq.s32.totalorder %s15, 0
    %p161 = por %p159, %p160
    %p162 = scmp.ne.s32.totalorder %s154, %s156
    %p163 = scmp.eq.s32.totalorder %s20, 1
    %p164 = por %p162, %p163
    %p165 = scmp.ne.s32.totalorder %s156, %s157
    %p166 = scmp.eq.s32.totalorder %s20, 0
    %p167 = por %p165, %p166
    %p168 = scmp.ne.s32.totalorder %s156, %s157
    %p169 = scmp.eq.s32.totalorder %s21, 1
    %p170 = por %p168, %p169
    %p172 = scmp.ne.s32.totalorder %s157, %s171
    %p173 = scmp.eq.s32.totalorder %s21, 0
    %p174 = por %p172, %p173
    %s176 = sadd.s32 %s175, 1
    %p179 = scmp.eq.s32.totalorder %s15, 1
    %p180 = scmp.ne.s32.totalorder %s175, %s177
    %p181 = scmp.eq.s32.totalorder %s15, 0
    %p182 = por %p180, %p181
    %p183 = scmp.ne.s32.totalorder %s175, %s177
    %p184 = scmp.eq.s32.totalorder %s20, 1
    %p185 = por %p183, %p184
    %p186 = scmp.ne.s32.totalorder %s177, %s178
    %p187 = scmp.eq.s32.totalorder %s20, 0
    %p188 = por %p186, %p187
    %p189 = scmp.ne.s32.totalorder %s177, %s178
    %p190 = scmp.eq.s32.totalorder %s21, 1
    %p191 = por %p189, %p190
    %p193 = scmp.ne.s32.totalorder %s178, %s192
    %p194 = scmp.eq.s32.totalorder %s21, 0
    %p195 = por %p193, %p194
    %s197 = sadd.s32 %s196, 1
    %p200 = scmp.eq.s32.totalorder %s15, 1
    %p201 = scmp.ne.s32.totalorder %s196, %s198
    %p202 = scmp.eq.s32.totalorder %s15, 0
    %p203 = por %p201, %p202
    %p204 = scmp.ne.s32.totalorder %s196, %s198
    %p205 = scmp.eq.s32.totalorder %s20, 1
    %p206 = por %p204, %p205
    %p207 = scmp.ne.s32.totalorder %s198, %s199
    %p208 = scmp.eq.s32.totalorder %s20, 0
    %p209 = por %p207, %p208
    %p210 = scmp.ne.s32.totalorder %s198, %s199
    %p211 = scmp.eq.s32.totalorder %s21, 1
    %p212 = por %p210, %p211
    %p214 = scmp.ne.s32.totalorder %s199, %s213
    %p215 = scmp.eq.s32.totalorder %s21, 0
    %p216 = por %p214, %p215
    %s217 = ssub.s32 %s15, %s22
    %p218 = scmp.eq.s32.totalorder %s217, 0
    %s220 = sadd.s32 %s219, 1
    %s221 = scalar_select %p218, %s219, %s220
    %p224 = pneg %p218
    %p225 = scmp.eq.s32.totalorder %s15, 1
    %p226 = por %p224, %p225
    %p227 = scmp.ne.s32.totalorder %s219, %s222
    %p228 = scmp.eq.s32.totalorder %s15, 0
    %p229 = por %p227, %p228
    %p230 = scmp.ne.s32.totalorder %s219, %s222
    %p231 = scmp.eq.s32.totalorder %s20, 1
    %p232 = por %p230, %p231
    %p233 = scmp.ne.s32.totalorder %s222, %s223
    %p234 = scmp.eq.s32.totalorder %s20, 0
    %p235 = por %p233, %p234
    %p236 = scmp.ne.s32.totalorder %s222, %s223
    %p237 = scmp.eq.s32.totalorder %s21, 1
    %p238 = por %p236, %p237
    %p240 = scmp.ne.s32.totalorder %s223, %s239
    %p241 = scmp.eq.s32.totalorder %s21, 0
    %p242 = por %p240, %p241
    %p243 = scmp.le.s32.totalorder 1, %s15
    %p244 = scmp.lt.s32.totalorder %s15, 3
    %p245 = pnand %p243, %p244
    %p246 = pneg %p245
    // Predicated region
    $region9: #{iris_classifier_forward.1} parent=5 // pred_check
      _
    $region10: #{iris_classifier_forward.1} parent=5 // pred_check_branch
      %248 = sbr.rel (%p245) target = $region12
    $region11: #{iris_classifier_forward.1} parent=5 // pred_region
      %s249 = ssub.s32 %s15, 1
      // Predicated region
      $region13: #{iris_classifier_forward.1} parent=11 // pred_check
        %p250 = pneg %p62
      $region14: #{iris_classifier_forward.1} parent=11 // pred_check_branch
        %252 = sbr.rel (%p250) target = $region16
      $region15: #{iris_classifier_forward.1} parent=11 // pred_region
        _
      $region16: #{iris_classifier_forward.1} parent=11 // pred_fallthru
        _
      // Predicated region
      $region17: #{iris_classifier_forward.1} parent=11 // pred_check
        %p253 = pneg %p83
      $region18: #{iris_classifier_forward.1} parent=11 // pred_check_branch
        %255 = sbr.rel (%p253) target = $region20
      $region19: #{iris_classifier_forward.1} parent=11 // pred_region
        _
      $region20: #{iris_classifier_forward.1} parent=11 // pred_fallthru
        _
      // Predicated region
      $region21: #{iris_classifier_forward.1} parent=11 // pred_check
        %p256 = pneg %p104
      $region22: #{iris_classifier_forward.1} parent=11 // pred_check_branch
        %258 = sbr.rel (%p256) target = $region24
      $region23: #{iris_classifier_forward.1} parent=11 // pred_region
        _
      $region24: #{iris_classifier_forward.1} parent=11 // pred_fallthru
        _
      // Predicated region
      $region25: #{iris_classifier_forward.1} parent=11 // pred_check
        %p259 = pneg %p125
      $region26: #{iris_classifier_forward.1} parent=11 // pred_check_branch
        %261 = sbr.rel (%p259) target = $region28
      $region27: #{iris_classifier_forward.1} parent=11 // pred_region
        _
      $region28: #{iris_classifier_forward.1} parent=11 // pred_fallthru
        _
      // Predicated region
      $region29: #{iris_classifier_forward.1} parent=11 // pred_check
        %p262 = pneg %p146
      $region30: #{iris_classifier_forward.1} parent=11 // pred_check_branch
        %264 = sbr.rel (%p262) target = $region32
      $region31: #{iris_classifier_forward.1} parent=11 // pred_region
        _
      $region32: #{iris_classifier_forward.1} parent=11 // pred_fallthru
        _
      // Predicated region
      $region33: #{iris_classifier_forward.1} parent=11 // pred_check
        %p265 = pneg %p167
      $region34: #{iris_classifier_forward.1} parent=11 // pred_check_branch
        %267 = sbr.rel (%p265) target = $region36
      $region35: #{iris_classifier_forward.1} parent=11 // pred_region
        _
      $region36: #{iris_classifier_forward.1} parent=11 // pred_fallthru
        _
      // Predicated region
      $region37: #{iris_classifier_forward.1} parent=11 // pred_check
        %p268 = pneg %p188
      $region38: #{iris_classifier_forward.1} parent=11 // pred_check_branch
        %270 = sbr.rel (%p268) target = $region40
      $region39: #{iris_classifier_forward.1} parent=11 // pred_region
        _
      $region40: #{iris_classifier_forward.1} parent=11 // pred_fallthru
        _
      // Predicated region
      $region41: #{iris_classifier_forward.1} parent=11 // pred_check
        %p271 = pneg %p209
      $region42: #{iris_classifier_forward.1} parent=11 // pred_check_branch
        %273 = sbr.rel (%p271) target = $region44
      $region43: #{iris_classifier_forward.1} parent=11 // pred_region
        _
      $region44: #{iris_classifier_forward.1} parent=11 // pred_fallthru
        _
    $region12: #{iris_classifier_forward.1} parent=5 // pred_fallthru
      _
    %p274 = scmp.lt.s32.totalorder %s15, 2
    // Predicated region
    $region45: #{iris_classifier_forward.1} parent=5 // pred_check
      %p275 = pneg %p274
    $region46: #{iris_classifier_forward.1} parent=5 // pred_check_branch
      %277 = sbr.rel (%p275) target = $region48
    $region47: #{iris_classifier_forward.1} parent=5 // pred_region
      // Predicated region
      $region49: #{iris_classifier_forward.1} parent=47 // pred_check
        %p278 = pneg %p35
      $region50: #{iris_classifier_forward.1} parent=47 // pred_check_branch
        %280 = sbr.rel (%p278) target = $region52
      $region51: #{iris_classifier_forward.1} parent=47 // pred_region
        %s281 = smul.u32 2, %s15
        %p282 = scmp.lt.s32.totalorder %s281, 3
        %s283 = scalar_select %p282, %s281, 3
        %s284 = smul.addr %s283, 8
        %s285 = scalar_lea.vmem %s0, %s284
        %s286 = smul.u32 2, %s15
      $region52: #{iris_classifier_forward.1} parent=47 // pred_fallthru
        _
    $region48: #{iris_classifier_forward.1} parent=5 // pred_fallthru
      _
    %p287 = scmp.le.s32.totalorder 1, %s15
    %p288 = scmp.lt.s32.totalorder %s15, 3
    %p289 = pnand %p287, %p288
    %p290 = pneg %p289
    // Predicated region
    $region53: #{iris_classifier_forward.1} parent=5 // pred_check
      _
    $region54: #{iris_classifier_forward.1} parent=5 // pred_check_branch
      %292 = sbr.rel (%p289) target = $region56
    $region55: #{iris_classifier_forward.1} parent=5 // pred_region
      %s293 = ssub.s32 %s15, 1
      %s294 = smul.u32 2, %s20
      %p295 = scmp.lt.s32.totalorder %s294, 3
      %s296 = scalar_select %p295, %s294, 3
      %s297 = smul.addr %s296, 8
      %s298 = scalar_lea.vmem %s0, %s297
      %p299 = pneg %p41
      %p300 = pneg %p38
      %p301 = pneg %p62
      %p302 = pneg %p59
      %p303 = pneg %p83
      %p304 = pneg %p80
      %p305 = pneg %p104
      %p306 = pneg %p101
      %p307 = pneg %p125
      %p308 = pneg %p122
      %p309 = pneg %p146
      %p310 = pneg %p143
      %p311 = pneg %p167
      %p312 = pneg %p164
      %p313 = pneg %p188
      %p314 = pneg %p185
      %p315 = pneg %p209
      %p316 = pneg %p206
      %p317 = pneg %p235
      %p318 = pneg %p232
      %s319 = smul.u32 2, %s20
      %p320 = scmp.lt.s32.totalorder %s319, 3
      %s321 = scalar_select %p320, %s319, 3
      %s322 = smul.addr %s321, 8
      %s323 = scalar_lea.vmem %s9, %s322
      %s324 = smul.u32 2, %s20
      %p325 = scmp.lt.s32.totalorder %s324, 3
      %s326 = scalar_select %p325, %s324, 3
      %s327 = smul.addr %s326, 8
      %s328 = scalar_lea.vmem %s0, %s327
      %s329 = smul.u32 2, %s20
      %s330 = smul.u32 2, %s20
      %p331 = scmp.lt.s32.totalorder %s330, 3
      %s332 = scalar_select %p331, %s330, 3
      %s333 = smul.addr %s332, 8
      %s334 = scalar_lea.vmem %s9, %s333
      %s335 = smul.u32 2, %s20
      %v337 = vld [vmem:[%s328] sm:$0xff]
      %v338 = vld [vmem:[%s328 + $0x8] sm:$0xff]
      %v339 = vpack.c.bf16 %v338, %v337
      %v340 = vld [vmem:[%s1] sm:$0x3]
      %v341 = vld [vmem:[%s2] sm:$0x1]
      %v343 = vlaneseq
      %v344 = vshrl.u32 %v343, 7
      %v345 = vsub.s32 0, %v344
      %v346 = vrot.slane %v341, %v345
      %vm348 = vcmask 31744
      %v350 = vsel %vm348, %v339, 0
      %vm352 = vcmask 1041408
      %v354 = vsel %vm352, %v340, 0
      %356 = vmatprep.subr.bf16.mxu0 0
      %357 = vmatpush1.bf16.msra.mxu0 %v354
      %358 = vmatprep.subr.bf16.mxu0 0
      %359 = vmatpush1.bf16.msra.mxu0 0
      %360 = vmatprep.subr.bf16.mxu0 0
      %361 = vmatpush1.bf16.msra.mxu0 0
      %362 = vmatprep.subr.bf16.mxu0 0
      %363 = vmatpush1.bf16.msra.mxu0 0
      %364 = vmatprep.subr.bf16.mxu0 0
      %365 = vmatpush1.bf16.msra.mxu0 0
      %366 = vmatprep.subr.bf16.mxu0 0
      %367 = vmatpush1.bf16.msra.mxu0 0
      %368 = vmatprep.subr.bf16.mxu0 0
      %369 = vmatpush1.bf16.msra.mxu0 0
      %370 = vmatprep.subr.bf16.mxu0 0
      %371 = vmatpush1.bf16.msra.mxu0 0
      %372 = vmatprep.subr.bf16.mxu0 0
      %373 = vmatpush1.bf16.msra.mxu0 0
      %374 = vmatprep.subr.bf16.mxu0 0
      %375 = vmatpush1.bf16.msra.mxu0 0
      %376 = vmatprep.subr.bf16.mxu0 0
      %377 = vmatpush1.bf16.msra.mxu0 0
      %378 = vmatprep.subr.bf16.mxu0 0
      %379 = vmatpush1.bf16.msra.mxu0 0
      %380 = vmatprep.subr.bf16.mxu0 0
      %381 = vmatpush1.bf16.msra.mxu0 0
      %382 = vmatprep.subr.bf16.mxu0 0
      %383 = vmatpush1.bf16.msra.mxu0 0
      %384 = vmatprep.subr.bf16.mxu0 0
      %385 = vmatpush1.bf16.msra.mxu0 0
      %386 = vmatprep.subr.bf16.mxu0 0
      %387 = vmatpush1.bf16.msra.mxu0 0
      %388 = vmatprep.mubr.bf16.mxu0 0
      %389 = vmatmul.mubr.bf16.gmra.mrb[0].mxu0 %v350
      %v390 = vpop.f32.mrb[0].mxu0
      %v391 = vadd.f32 %v346, %v390
      %v392 = vpop.f32.mrb[0].mxu0
      %v393 = vpop.f32.mrb[0].mxu0
      %v394 = vadd.f32 %v346, %v393
      %v395 = vpop.f32.mrb[0].mxu0
      %396 = vdwg.mxu0
      %v397 = vmax.f32 %v391, 0.0
      %v398 = vmax.f32 %v394, 0.0
      %v399 = vpack.c.bf16 %v398, %v397
      %v400 = vld [vmem:[%s3] sm:$0xf]
      %v401 = vld [vmem:[%s3 + $0x4] sm:$0xf]
      %v402 = vld [vmem:[%s3 + $0x8] sm:$0xf]
      %v403 = vld [vmem:[%s3 + $0xc] sm:$0xf]
      %v404 = vld [vmem:[%s3 + $0x10] sm:$0xf]
      %v405 = vld [vmem:[%s3 + $0x14] sm:$0xf]
      %v406 = vld [vmem:[%s3 + $0x18] sm:$0xf]
      %v407 = vld [vmem:[%s3 + $0x1c] sm:$0xf]
      %v408 = vld [vmem:[%s3 + $0x20] sm:$0xf]
      %v409 = vld [vmem:[%s3 + $0x24] sm:$0xf]
      %v410 = vld [vmem:[%s3 + $0x28] sm:$0xf]
      %v411 = vld [vmem:[%s3 + $0x2c] sm:$0xf]
      %v412 = vld [vmem:[%s3 + $0x30] sm:$0xf]
      %v413 = vld [vmem:[%s3 + $0x34] sm:$0xf]
      %v414 = vld [vmem:[%s3 + $0x38] sm:$0xf]
      %v415 = vld [vmem:[%s3 + $0x3c] sm:$0xf]
      %v416 = vld [vmem:[%s4] sm:$0x1]
      %v418 = vlaneseq
      %v419 = vshrl.u32 %v418, 7
      %v420 = vsub.s32 0, %v419
      %v421 = vrot.slane %v416, %v420
      %v439 = vunpack.c.l.b16 %v400
      %v440 = vunpack.c.l.b16 %v401
      %v441 = vunpack.c.l.b16 %v402
      %v442 = vunpack.c.l.b16 %v403
      %v443 = vunpack.c.l.b16 %v404
      %v444 = vunpack.c.l.b16 %v405
      %v445 = vunpack.c.l.b16 %v406
      %v446 = vunpack.c.l.b16 %v407
      %v447 = vunpack.c.l.b16 %v408
      %v448 = vunpack.c.l.b16 %v409
      %v449 = vunpack.c.l.b16 %v410
      %v450 = vunpack.c.l.b16 %v411
      %v451 = vunpack.c.l.b16 %v412
      %v452 = vunpack.c.l.b16 %v413
      %v453 = vunpack.c.l.b16 %v414
      %v454 = vunpack.c.l.b16 %v415
      %v455 = vpack.c.b16 %v440, %v439
      %v456 = vpack.c.b16 %v442, %v441
      %v457 = vpack.c.b16 %v444, %v443
      %v458 = vpack.c.b16 %v446, %v445
      %v459 = vpack.c.b16 %v448, %v447
      %v460 = vpack.c.b16 %v450, %v449
      %v461 = vpack.c.b16 %v452, %v451
      %v462 = vpack.c.b16 %v454, %v453
      %471 = vmatprep.subr.bf16.mxu0 0
      %472 = vmatpush1.bf16.msra.mxu0 %v455
      %473 = vmatprep.subr.bf16.mxu0 0
      %474 = vmatpush1.bf16.msra.mxu0 %v456
      %475 = vmatprep.subr.bf16.mxu0 0
      %476 = vmatpush1.bf16.msra.mxu0 %v457
      %477 = vmatprep.subr.bf16.mxu0 0
      %478 = vmatpush1.bf16.msra.mxu0 %v458
      %479 = vmatprep.subr.bf16.mxu0 0
      %480 = vmatpush1.bf16.msra.mxu0 %v459
      %481 = vmatprep.subr.bf16.mxu0 0
      %482 = vmatpush1.bf16.msra.mxu0 %v460
      %483 = vmatprep.subr.bf16.mxu0 0
      %484 = vmatpush1.bf16.msra.mxu0 %v461
      %485 = vmatprep.subr.bf16.mxu0 0
      %486 = vmatpush1.bf16.msra.mxu0 %v462
      %487 = vmatprep.subr.bf16.mxu0 0
      %488 = vmatpush1.bf16.msra.mxu0 0
      %489 = vmatprep.subr.bf16.mxu0 0
      %490 = vmatpush1.bf16.msra.mxu0 0
      %491 = vmatprep.subr.bf16.mxu0 0
      %492 = vmatpush1.bf16.msra.mxu0 0
      %493 = vmatprep.subr.bf16.mxu0 0
      %494 = vmatpush1.bf16.msra.mxu0 0
      %495 = vmatprep.subr.bf16.mxu0 0
      %496 = vmatpush1.bf16.msra.mxu0 0
      %497 = vmatprep.subr.bf16.mxu0 0
      %498 = vmatpush1.bf16.msra.mxu0 0
      %499 = vmatprep.subr.bf16.mxu0 0
      %500 = vmatpush1.bf16.msra.mxu0 0
      %501 = vmatprep.subr.bf16.mxu0 0
      %502 = vmatpush1.bf16.msra.mxu0 0
      %503 = vmatprep.mubr.bf16.mxu0 0
      %504 = vmatmul.mubr.bf16.gmra.mrb[0].mxu0 %v399
      %v505 = vpop.f32.mrb[0].mxu0
      %v506 = vadd.f32 %v421, %v505
      %v507 = vpop.f32.mrb[0].mxu0
      %v508 = vpop.f32.mrb[0].mxu0
      %v509 = vadd.f32 %v421, %v508
      %v510 = vpop.f32.mrb[0].mxu0
      %511 = vdwg.mxu0
      %v512 = vmax.f32 %v506, 0.0
      %v513 = vmax.f32 %v509, 0.0
      %v514 = vpack.c.bf16 %v513, %v512
      %v515 = vld [vmem:[%s5] sm:$0xf]
      %v516 = vld [vmem:[%s5 + $0x4] sm:$0xf]
      %v517 = vld [vmem:[%s5 + $0x8] sm:$0xf]
      %v518 = vld [vmem:[%s5 + $0xc] sm:$0xf]
      %v519 = vld [vmem:[%s5 + $0x10] sm:$0xf]
      %v520 = vld [vmem:[%s5 + $0x14] sm:$0xf]
      %v521 = vld [vmem:[%s5 + $0x18] sm:$0xf]
      %v522 = vld [vmem:[%s5 + $0x1c] sm:$0xf]
      %v523 = vld [vmem:[%s6] sm:$0x1]
      %v525 = vlaneseq
      %v526 = vshrl.u32 %v525, 7
      %v527 = vsub.s32 0, %v526
      %v528 = vrot.slane %v523, %v527
      %v538 = vunpack.c.l.b16 %v515
      %v539 = vunpack.c.l.b16 %v516
      %v540 = vunpack.c.l.b16 %v517
      %v541 = vunpack.c.l.b16 %v518
      %v542 = vunpack.c.l.b16 %v519
      %v543 = vunpack.c.l.b16 %v520
      %v544 = vunpack.c.l.b16 %v521
      %v545 = vunpack.c.l.b16 %v522
      %v546 = vpack.c.b16 %v539, %v538
      %v547 = vpack.c.b16 %v541, %v540
      %v548 = vpack.c.b16 %v543, %v542
      %v549 = vpack.c.b16 %v545, %v544
      %vm554 = vcmask 523264
      %v556 = vsel %vm554, %v514, 0
      %558 = vmatprep.subr.bf16.mxu0 0
      %559 = vmatpush1.bf16.msra.mxu0 %v546
      %560 = vmatprep.subr.bf16.mxu0 0
      %561 = vmatpush1.bf16.msra.mxu0 %v547
      %562 = vmatprep.subr.bf16.mxu0 0
      %563 = vmatpush1.bf16.msra.mxu0 %v548
      %564 = vmatprep.subr.bf16.mxu0 0
      %565 = vmatpush1.bf16.msra.mxu0 %v549
      %566 = vmatprep.subr.bf16.mxu0 0
      %567 = vmatpush1.bf16.msra.mxu0 0
      %568 = vmatprep.subr.bf16.mxu0 0
      %569 = vmatpush1.bf16.msra.mxu0 0
      %570 = vmatprep.subr.bf16.mxu0 0
      %571 = vmatpush1.bf16.msra.mxu0 0
      %572 = vmatprep.subr.bf16.mxu0 0
      %573 = vmatpush1.bf16.msra.mxu0 0
      %574 = vmatprep.subr.bf16.mxu0 0
      %575 = vmatpush1.bf16.msra.mxu0 0
      %576 = vmatprep.subr.bf16.mxu0 0
      %577 = vmatpush1.bf16.msra.mxu0 0
      %578 = vmatprep.subr.bf16.mxu0 0
      %579 = vmatpush1.bf16.msra.mxu0 0
      %580 = vmatprep.subr.bf16.mxu0 0
      %581 = vmatpush1.bf16.msra.mxu0 0
      %582 = vmatprep.subr.bf16.mxu0 0
      %583 = vmatpush1.bf16.msra.mxu0 0
      %584 = vmatprep.subr.bf16.mxu0 0
      %585 = vmatpush1.bf16.msra.mxu0 0
      %586 = vmatprep.subr.bf16.mxu0 0
      %587 = vmatpush1.bf16.msra.mxu0 0
      %588 = vmatprep.subr.bf16.mxu0 0
      %589 = vmatpush1.bf16.msra.mxu0 0
      %590 = vmatprep.mubr.bf16.mxu0 0
      %591 = vmatmul.mubr.bf16.gmra.mrb[0].mxu0 %v556
      %v592 = vpop.f32.mrb[0].mxu0
      %v593 = vadd.f32 %v528, %v592
      %v594 = vpop.f32.mrb[0].mxu0
      %v595 = vpop.f32.mrb[0].mxu0
      %v596 = vadd.f32 %v528, %v595
      %v597 = vpop.f32.mrb[0].mxu0
      %598 = vdwg.mxu0
      %v599 = vmax.f32 %v593, 0.0
      %v600 = vmax.f32 %v596, 0.0
      %v601 = vpack.c.bf16 %v600, %v599
      %v602 = vld [vmem:[%s7] sm:$0xf]
      %v603 = vld [vmem:[%s7 + $0x4] sm:$0xf]
      %v604 = vld [vmem:[%s7 + $0x8] sm:$0xf]
      %v605 = vld [vmem:[%s7 + $0xc] sm:$0xf]
      %v606 = vld [vmem:[%s8] sm:$0x1]
      %v608 = vlaneseq
      %v609 = vshrl.u32 %v608, 7
      %v610 = vsub.s32 0, %v609
      %v611 = vrot.slane %v606, %v610
      %v617 = vunpack.c.l.b16 %v602
      %v618 = vunpack.c.l.b16 %v603
      %v619 = vunpack.c.l.b16 %v604
      %v620 = vunpack.c.l.b16 %v605
      %v621 = vpack.c.b16 %v618, %v617
      %v622 = vpack.c.b16 %v620, %v619
      %vm625 = vcmask 261120
      %v627 = vsel %vm625, %v601, 0
      %629 = vmatprep.subr.bf16.mxu0 0
      %630 = vmatpush1.bf16.msra.mxu0 %v621
      %631 = vmatprep.subr.bf16.mxu0 0
      %632 = vmatpush1.bf16.msra.mxu0 %v622
      %633 = vmatprep.subr.bf16.mxu0 0
      %634 = vmatpush1.bf16.msra.mxu0 0
      %635 = vmatprep.subr.bf16.mxu0 0
      %636 = vmatpush1.bf16.msra.mxu0 0
      %637 = vmatprep.subr.bf16.mxu0 0
      %638 = vmatpush1.bf16.msra.mxu0 0
      %639 = vmatprep.subr.bf16.mxu0 0
      %640 = vmatpush1.bf16.msra.mxu0 0
      %641 = vmatprep.subr.bf16.mxu0 0
      %642 = vmatpush1.bf16.msra.mxu0 0
      %643 = vmatprep.subr.bf16.mxu0 0
      %644 = vmatpush1.bf16.msra.mxu0 0
      %645 = vmatprep.subr.bf16.mxu0 0
      %646 = vmatpush1.bf16.msra.mxu0 0
      %647 = vmatprep.subr.bf16.mxu0 0
      %648 = vmatpush1.bf16.msra.mxu0 0
      %649 = vmatprep.subr.bf16.mxu0 0
      %650 = vmatpush1.bf16.msra.mxu0 0
      %651 = vmatprep.subr.bf16.mxu0 0
      %652 = vmatpush1.bf16.msra.mxu0 0
      %653 = vmatprep.subr.bf16.mxu0 0
      %654 = vmatpush1.bf16.msra.mxu0 0
      %655 = vmatprep.subr.bf16.mxu0 0
      %656 = vmatpush1.bf16.msra.mxu0 0
      %657 = vmatprep.subr.bf16.mxu0 0
      %658 = vmatpush1.bf16.msra.mxu0 0
      %659 = vmatprep.subr.bf16.mxu0 0
      %660 = vmatpush1.bf16.msra.mxu0 0
      %661 = vmatprep.mubr.bf16.mxu0 0
      %662 = vmatmul.mubr.bf16.gmra.mrb[0].mxu0 %v627
      %v663 = vpop.f32.mrb[0].mxu0
      %v664 = vadd.f32 %v611, %v663
      %v665 = vpop.f32.mrb[0].mxu0
      %v666 = vpop.f32.mrb[0].mxu0
      %v667 = vadd.f32 %v611, %v666
      %v668 = vpop.f32.mrb[0].mxu0
      %669 = vdwg.mxu0
      %vm670 = vcmask 23552
      %671 = vst.msk [vmem:[%s334] sm:$0xff] %vm670, %v664
      %672 = vst.msk [vmem:[%s334 + $0x8] sm:$0xff] %vm670, %v667
      %s673 = smul.u32 2, %s20
      %p674 = scmp.lt.s32.totalorder %s673, 3
      %s675 = scalar_select %p674, %s673, 3
      %s676 = smul.addr %s675, 8
      %s677 = scalar_lea.vmem %s9, %s676
      // Predicated region
      $region57: #{iris_classifier_forward.1} parent=55 // pred_check
        %p678 = pneg %p232
      $region58: #{iris_classifier_forward.1} parent=55 // pred_check_branch
        %680 = sbr.rel (%p678) target = $region60
      $region59: #{iris_classifier_forward.1} parent=55 // pred_region
        %s681 = smul.u32 2, %s20
      $region60: #{iris_classifier_forward.1} parent=55 // pred_fallthru
        _
    $region56: #{iris_classifier_forward.1} parent=5 // pred_fallthru
      _
    %p682 = scmp.le.s32.totalorder 2, %s15
    // Predicated region
    $region61: #{iris_classifier_forward.1} parent=5 // pred_check
      %p683 = pneg %p682
    $region62: #{iris_classifier_forward.1} parent=5 // pred_check_branch
      %685 = sbr.rel (%p683) target = $region64
    $region63: #{iris_classifier_forward.1} parent=5 // pred_region
      %s686 = ssub.s32 %s15, 2
      // Predicated region
      $region65: #{iris_classifier_forward.1} parent=63 // pred_check
        %p687 = pneg %p238
      $region66: #{iris_classifier_forward.1} parent=63 // pred_check_branch
        %689 = sbr.rel (%p687) target = $region68
      $region67: #{iris_classifier_forward.1} parent=63 // pred_region
        %s690 = smul.u32 2, %s21
        %p691 = scmp.lt.s32.totalorder %s690, 3
        %s692 = scalar_select %p691, %s690, 3
        %s693 = smul.addr %s692, 8
        %s694 = scalar_lea.vmem %s9, %s693
      $region68: #{iris_classifier_forward.1} parent=63 // pred_fallthru
        _
    $region64: #{iris_classifier_forward.1} parent=5 // pred_fallthru
      _
  $region6: #{iris_classifier_forward.1} parent=0 // loop_footer
    %s19 = sadd.s32 1, %s15
  $region7: #{iris_classifier_forward.1} parent=0 // loop_footer_branch
    %14 = sbr.rel target = $region3
  $region8: #{iris_classifier_forward.1} parent=0 // loop_exit
    _

</llo_original>
